<compile_context>
chip_gen: v6e
topology: v6e:2x2x1
jax: 0.10.0
libtpu: 0.0.40
codegen_flags: <defaults>
</compile_context>

<pallas_src>
import jax
import jax.numpy as jnp
from jax import lax
from jax.experimental import pallas as pl
from jax.experimental.pallas import tpu as pltpu


def lstm_kernel(xproj_ref, wh_ref, h_out_ref, c_out_ref):
    """xproj_ref: (T, 4H) precomputed emb@Wx^T + bx + bh; wh_ref: (H, 4H)."""
    H = h_out_ref.shape[1]
    T = xproj_ref.shape[0]

    wh = wh_ref[...]                                   # (H, 4H), VMEM-resident

    def step(t, carry):
        h, c = carry
        # gates = x_proj[t] + h @ Wh^T  (input projection + both biases were
        # hoisted out of the serial recurrence into x_proj in the wrapper).
        gates = (jnp.dot(h, wh, preferred_element_type=jnp.float32)
                 + xproj_ref[pl.ds(t, 1), :])          # (1, 4H)
        i_g = jax.nn.sigmoid(gates[:, 0 * H:1 * H])
        f_g = jax.nn.sigmoid(gates[:, 1 * H:2 * H])
        o_g = jax.nn.sigmoid(gates[:, 2 * H:3 * H])
        u_g = jnp.tanh(gates[:, 3 * H:4 * H])
        c_new = f_g * c + i_g * u_g
        h_new = o_g * jnp.tanh(c_new)
        return (h_new, c_new)

    h0 = jnp.zeros((1, H), jnp.float32)
    c0 = jnp.zeros((1, H), jnp.float32)
    # T is static and small -> fully unrolled serial recurrence in one kernel.
    h, c = lax.fori_loop(0, T, step, (h0, c0), unroll=True)

    h_out_ref[...] = h
    c_out_ref[...] = c


def outer_lstm_forward(sentence, embedding, wx, bx, wh, bh):
    """sentence: (T,) int32; embedding: (V, E); wx: (4H, E); wh: (4H, H)."""
    T = sentence.shape[0]
    H = wh.shape[1]

    # Glue in plain JAX: embedding gather + batched input projection (no
    # sequential dependence), and fold both biases into it.
    x_emb = embedding[sentence].astype(jnp.float32)                # (T, E)
    x_proj = x_emb @ wx.T.astype(jnp.float32) \
        + (bx + bh).astype(jnp.float32)[None, :]                   # (T, 4H)
    wh_t = wh.T.astype(jnp.float32)                                # (H, 4H)

    h, c = pl.pallas_call(
        lstm_kernel,
        out_shape=(jax.ShapeDtypeStruct((1, H), jnp.float32),
                   jax.ShapeDtypeStruct((1, H), jnp.float32)),
        grid=(1,),
        in_specs=[
            pl.BlockSpec((T, 4 * H), lambda i: (0, 0)),    # x_proj (resident)
            pl.BlockSpec((H, 4 * H), lambda i: (0, 0)),    # Wh^T  (resident)
        ],
        out_specs=(
            pl.BlockSpec((1, H), lambda i: (0, 0)),        # h (final)
            pl.BlockSpec((1, H), lambda i: (0, 0)),        # c (final)
        ),
        compiler_params=pltpu.CompilerParams(
            dimension_semantics=("arbitrary",)),
    )(x_proj, wh_t)
    return h, c


def outer_lstm_reference(sentence, embedding, wx, bx, wh, bh):
    """Pure-JAX reference matching the PyTorch forward."""
    H = wh.shape[1]
    h = jnp.zeros((1, H), jnp.float32)
    c = jnp.zeros((1, H), jnp.float32)

    def step(carry, w_idx):
        h, c = carry
        emb = embedding[w_idx][None, :]
        gates = emb @ wx.T + bx + h @ wh.T + bh
        i_g = jax.nn.sigmoid(gates[:, 0 * H:1 * H])
        f_g = jax.nn.sigmoid(gates[:, 1 * H:2 * H])
        o_g = jax.nn.sigmoid(gates[:, 2 * H:3 * H])
        u_g = jnp.tanh(gates[:, 3 * H:4 * H])
        c = f_g * c + i_g * u_g
        h = o_g * jnp.tanh(c)
        return (h, c), None

    (h, c), _ = jax.lax.scan(step, (h, c), sentence)
    return h, c


if __name__ == "__main__":
    # Small shapes consistent with the module: vocab=50, embed=16, hidden=32, seq=8.
    vocab_size, embedding_dim, hidden_dim, seq_len = 50, 16, 32, 8

    key = jax.random.PRNGKey(0)
    k_emb, k_wx, k_bx, k_wh, k_bh, k_sent = jax.random.split(key, 6)

    embedding = jax.random.normal(k_emb, (vocab_size, embedding_dim), jnp.float32)
    wx = 0.1 * jax.random.normal(k_wx, (4 * hidden_dim, embedding_dim), jnp.float32)
    bx = 0.1 * jax.random.normal(k_bx, (4 * hidden_dim,), jnp.float32)
    wh = 0.1 * jax.random.normal(k_wh, (4 * hidden_dim, hidden_dim), jnp.float32)
    bh = 0.1 * jax.random.normal(k_bh, (4 * hidden_dim,), jnp.float32)
    sentence = jax.random.randint(k_sent, (seq_len,), 0, vocab_size, jnp.int32)

    h, c = outer_lstm_forward(sentence, embedding, wx, bx, wh, bh)
    h, c = jax.block_until_ready((h, c))

    h_ref, c_ref = outer_lstm_reference(sentence, embedding, wx, bx, wh, bh)
    assert jnp.allclose(h, h_ref, atol=1e-5, rtol=1e-5), "h mismatch"
    assert jnp.allclose(c, c_ref, atol=1e-5, rtol=1e-5), "c mismatch"

    print("KERNEL_OK")
</pallas_src>

<mosaic_0001>
module attributes {stable_mosaic.version = 11 : i64} {
  func.func @lstm_kernel(%arg0: i32, %arg1: memref<8x128xf32, #tpu.memory_space<vmem>>, %arg2: memref<32x128xf32, #tpu.memory_space<vmem>>, %arg3: memref<1x32xf32, #tpu.memory_space<vmem>>, %arg4: memref<1x32xf32, #tpu.memory_space<vmem>>) attributes {dimension_semantics = [#tpu.dimension_semantics<arbitrary>], iteration_bounds = array<i64: 1>, scalar_prefetch = 0 : i64, scratch_operands = 0 : i64, tpu.core_type = #tpu.core_type<tc>, window_params = [{pipeline_mode = #tpu.pipeline_mode<synchronous>, transform_indices = @transform_0, window_bounds = array<i64: 8, 128>}, {pipeline_mode = #tpu.pipeline_mode<synchronous>, transform_indices = @transform_1, window_bounds = array<i64: 32, 128>}, {pipeline_mode = #tpu.pipeline_mode<synchronous>, transform_indices = @transform_2, window_bounds = array<i64: 1, 32>}, {pipeline_mode = #tpu.pipeline_mode<synchronous>, transform_indices = @transform_3, window_bounds = array<i64: 1, 32>}]} {
    %c0 = arith.constant 0 : index
    %c0_0 = arith.constant 0 : index
    %0 = vector.load %arg2[%c0, %c0_0] : memref<32x128xf32, #tpu.memory_space<vmem>>, vector<32x128xf32>
    %cst = arith.constant 0.000000e+00 : f32
    %1 = vector.broadcast %cst : f32 to vector<1x32xf32>
    %cst_1 = arith.constant 0.000000e+00 : f32
    %2 = vector.broadcast %cst_1 : f32 to vector<1x32xf32>
    %c0_i32 = arith.constant 0 : i32
    %cst_2 = arith.constant dense<0.000000e+00> : vector<1x128xf32>
    %3 = tpu.matmul %1, %0, %cst_2 {dimension_numbers = #tpu.dot_dimension_numbers<[1], [0], [0], [1], [0, 0, 1, 1], [], []>} : vector<1x32xf32>, vector<32x128xf32>, vector<1x128xf32> -> vector<1x128xf32>
    %4 = arith.index_cast %c0_i32 : i32 to index
    %c0_3 = arith.constant 0 : index
    %5 = vector.load %arg1[%4, %c0_3] : memref<8x128xf32, #tpu.memory_space<vmem>>, vector<1x128xf32>
    %6 = arith.addf %3, %5 : vector<1x128xf32>
    %7 = vector.extract_strided_slice %6 {offsets = [0, 0], sizes = [1, 32], strides = [1, 1]} : vector<1x128xf32> to vector<1x32xf32>
    %8 = arith.negf %7 : vector<1x32xf32>
    %9 = math.exp %8 : vector<1x32xf32>
    %cst_4 = arith.constant 1.000000e+00 : f32
    %10 = vector.broadcast %cst_4 : f32 to vector<1x32xf32>
    %11 = arith.addf %10, %9 : vector<1x32xf32>
    %12 = arith.divf %10, %11 : vector<1x32xf32>
    %13 = vector.extract_strided_slice %6 {offsets = [0, 32], sizes = [1, 32], strides = [1, 1]} : vector<1x128xf32> to vector<1x32xf32>
    %14 = arith.negf %13 : vector<1x32xf32>
    %15 = math.exp %14 : vector<1x32xf32>
    %cst_5 = arith.constant 1.000000e+00 : f32
    %16 = vector.broadcast %cst_5 : f32 to vector<1x32xf32>
    %17 = arith.addf %16, %15 : vector<1x32xf32>
    %18 = arith.divf %16, %17 : vector<1x32xf32>
    %19 = vector.extract_strided_slice %6 {offsets = [0, 64], sizes = [1, 32], strides = [1, 1]} : vector<1x128xf32> to vector<1x32xf32>
    %20 = arith.negf %19 : vector<1x32xf32>
    %21 = math.exp %20 : vector<1x32xf32>
    %cst_6 = arith.constant 1.000000e+00 : f32
    %22 = vector.broadcast %cst_6 : f32 to vector<1x32xf32>
    %23 = arith.addf %22, %21 : vector<1x32xf32>
    %24 = arith.divf %22, %23 : vector<1x32xf32>
    %25 = vector.extract_strided_slice %6 {offsets = [0, 96], sizes = [1, 32], strides = [1, 1]} : vector<1x128xf32> to vector<1x32xf32>
    %26 = math.tanh %25 : vector<1x32xf32>
    %27 = arith.mulf %18, %2 : vector<1x32xf32>
    %28 = arith.mulf %12, %26 : vector<1x32xf32>
    %29 = arith.addf %27, %28 : vector<1x32xf32>
    %30 = math.tanh %29 : vector<1x32xf32>
    %31 = arith.mulf %24, %30 : vector<1x32xf32>
    %c1_i32 = arith.constant 1 : i32
    %cst_7 = arith.constant dense<0.000000e+00> : vector<1x128xf32>
    %32 = tpu.matmul %31, %0, %cst_7 {dimension_numbers = #tpu.dot_dimension_numbers<[1], [0], [0], [1], [0, 0, 1, 1], [], []>} : vector<1x32xf32>, vector<32x128xf32>, vector<1x128xf32> -> vector<1x128xf32>
    %33 = arith.index_cast %c1_i32 : i32 to index
    %c0_8 = arith.constant 0 : index
    %34 = vector.load %arg1[%33, %c0_8] : memref<8x128xf32, #tpu.memory_space<vmem>>, vector<1x128xf32>
    %35 = arith.addf %32, %34 : vector<1x128xf32>
    %36 = vector.extract_strided_slice %35 {offsets = [0, 0], sizes = [1, 32], strides = [1, 1]} : vector<1x128xf32> to vector<1x32xf32>
    %37 = arith.negf %36 : vector<1x32xf32>
    %38 = math.exp %37 : vector<1x32xf32>
    %cst_9 = arith.constant 1.000000e+00 : f32
    %39 = vector.broadcast %cst_9 : f32 to vector<1x32xf32>
    %40 = arith.addf %39, %38 : vector<1x32xf32>
    %41 = arith.divf %39, %40 : vector<1x32xf32>
    %42 = vector.extract_strided_slice %35 {offsets = [0, 32], sizes = [1, 32], strides = [1, 1]} : vector<1x128xf32> to vector<1x32xf32>
    %43 = arith.negf %42 : vector<1x32xf32>
    %44 = math.exp %43 : vector<1x32xf32>
    %cst_10 = arith.constant 1.000000e+00 : f32
    %45 = vector.broadcast %cst_10 : f32 to vector<1x32xf32>
    %46 = arith.addf %45, %44 : vector<1x32xf32>
    %47 = arith.divf %45, %46 : vector<1x32xf32>
    %48 = vector.extract_strided_slice %35 {offsets = [0, 64], sizes = [1, 32], strides = [1, 1]} : vector<1x128xf32> to vector<1x32xf32>
    %49 = arith.negf %48 : vector<1x32xf32>
    %50 = math.exp %49 : vector<1x32xf32>
    %cst_11 = arith.constant 1.000000e+00 : f32
    %51 = vector.broadcast %cst_11 : f32 to vector<1x32xf32>
    %52 = arith.addf %51, %50 : vector<1x32xf32>
    %53 = arith.divf %51, %52 : vector<1x32xf32>
    %54 = vector.extract_strided_slice %35 {offsets = [0, 96], sizes = [1, 32], strides = [1, 1]} : vector<1x128xf32> to vector<1x32xf32>
    %55 = math.tanh %54 : vector<1x32xf32>
    %56 = arith.mulf %47, %29 : vector<1x32xf32>
    %57 = arith.mulf %41, %55 : vector<1x32xf32>
    %58 = arith.addf %56, %57 : vector<1x32xf32>
    %59 = math.tanh %58 : vector<1x32xf32>
    %60 = arith.mulf %53, %59 : vector<1x32xf32>
    %c2_i32 = arith.constant 2 : i32
    %cst_12 = arith.constant dense<0.000000e+00> : vector<1x128xf32>
    %61 = tpu.matmul %60, %0, %cst_12 {dimension_numbers = #tpu.dot_dimension_numbers<[1], [0], [0], [1], [0, 0, 1, 1], [], []>} : vector<1x32xf32>, vector<32x128xf32>, vector<1x128xf32> -> vector<1x128xf32>
    %62 = arith.index_cast %c2_i32 : i32 to index
    %c0_13 = arith.constant 0 : index
    %63 = vector.load %arg1[%62, %c0_13] : memref<8x128xf32, #tpu.memory_space<vmem>>, vector<1x128xf32>
    %64 = arith.addf %61, %63 : vector<1x128xf32>
    %65 = vector.extract_strided_slice %64 {offsets = [0, 0], sizes = [1, 32], strides = [1, 1]} : vector<1x128xf32> to vector<1x32xf32>
    %66 = arith.negf %65 : vector<1x32xf32>
    %67 = math.exp %66 : vector<1x32xf32>
    %cst_14 = arith.constant 1.000000e+00 : f32
    %68 = vector.broadcast %cst_14 : f32 to vector<1x32xf32>
    %69 = arith.addf %68, %67 : vector<1x32xf32>
    %70 = arith.divf %68, %69 : vector<1x32xf32>
    %71 = vector.extract_strided_slice %64 {offsets = [0, 32], sizes = [1, 32], strides = [1, 1]} : vector<1x128xf32> to vector<1x32xf32>
    %72 = arith.negf %71 : vector<1x32xf32>
    %73 = math.exp %72 : vector<1x32xf32>
    %cst_15 = arith.constant 1.000000e+00 : f32
    %74 = vector.broadcast %cst_15 : f32 to vector<1x32xf32>
    %75 = arith.addf %74, %73 : vector<1x32xf32>
    %76 = arith.divf %74, %75 : vector<1x32xf32>
    %77 = vector.extract_strided_slice %64 {offsets = [0, 64], sizes = [1, 32], strides = [1, 1]} : vector<1x128xf32> to vector<1x32xf32>
    %78 = arith.negf %77 : vector<1x32xf32>
    %79 = math.exp %78 : vector<1x32xf32>
    %cst_16 = arith.constant 1.000000e+00 : f32
    %80 = vector.broadcast %cst_16 : f32 to vector<1x32xf32>
    %81 = arith.addf %80, %79 : vector<1x32xf32>
    %82 = arith.divf %80, %81 : vector<1x32xf32>
    %83 = vector.extract_strided_slice %64 {offsets = [0, 96], sizes = [1, 32], strides = [1, 1]} : vector<1x128xf32> to vector<1x32xf32>
    %84 = math.tanh %83 : vector<1x32xf32>
    %85 = arith.mulf %76, %58 : vector<1x32xf32>
    %86 = arith.mulf %70, %84 : vector<1x32xf32>
    %87 = arith.addf %85, %86 : vector<1x32xf32>
    %88 = math.tanh %87 : vector<1x32xf32>
    %89 = arith.mulf %82, %88 : vector<1x32xf32>
    %c3_i32 = arith.constant 3 : i32
    %cst_17 = arith.constant dense<0.000000e+00> : vector<1x128xf32>
    %90 = tpu.matmul %89, %0, %cst_17 {dimension_numbers = #tpu.dot_dimension_numbers<[1], [0], [0], [1], [0, 0, 1, 1], [], []>} : vector<1x32xf32>, vector<32x128xf32>, vector<1x128xf32> -> vector<1x128xf32>
    %91 = arith.index_cast %c3_i32 : i32 to index
    %c0_18 = arith.constant 0 : index
    %92 = vector.load %arg1[%91, %c0_18] : memref<8x128xf32, #tpu.memory_space<vmem>>, vector<1x128xf32>
    %93 = arith.addf %90, %92 : vector<1x128xf32>
    %94 = vector.extract_strided_slice %93 {offsets = [0, 0], sizes = [1, 32], strides = [1, 1]} : vector<1x128xf32> to vector<1x32xf32>
    %95 = arith.negf %94 : vector<1x32xf32>
    %96 = math.exp %95 : vector<1x32xf32>
    %cst_19 = arith.constant 1.000000e+00 : f32
    %97 = vector.broadcast %cst_19 : f32 to vector<1x32xf32>
    %98 = arith.addf %97, %96 : vector<1x32xf32>
    %99 = arith.divf %97, %98 : vector<1x32xf32>
    %100 = vector.extract_strided_slice %93 {offsets = [0, 32], sizes = [1, 32], strides = [1, 1]} : vector<1x128xf32> to vector<1x32xf32>
    %101 = arith.negf %100 : vector<1x32xf32>
    %102 = math.exp %101 : vector<1x32xf32>
    %cst_20 = arith.constant 1.000000e+00 : f32
    %103 = vector.broadcast %cst_20 : f32 to vector<1x32xf32>
    %104 = arith.addf %103, %102 : vector<1x32xf32>
    %105 = arith.divf %103, %104 : vector<1x32xf32>
    %106 = vector.extract_strided_slice %93 {offsets = [0, 64], sizes = [1, 32], strides = [1, 1]} : vector<1x128xf32> to vector<1x32xf32>
    %107 = arith.negf %106 : vector<1x32xf32>
    %108 = math.exp %107 : vector<1x32xf32>
    %cst_21 = arith.constant 1.000000e+00 : f32
    %109 = vector.broadcast %cst_21 : f32 to vector<1x32xf32>
    %110 = arith.addf %109, %108 : vector<1x32xf32>
    %111 = arith.divf %109, %110 : vector<1x32xf32>
    %112 = vector.extract_strided_slice %93 {offsets = [0, 96], sizes = [1, 32], strides = [1, 1]} : vector<1x128xf32> to vector<1x32xf32>
    %113 = math.tanh %112 : vector<1x32xf32>
    %114 = arith.mulf %105, %87 : vector<1x32xf32>
    %115 = arith.mulf %99, %113 : vector<1x32xf32>
    %116 = arith.addf %114, %115 : vector<1x32xf32>
    %117 = math.tanh %116 : vector<1x32xf32>
    %118 = arith.mulf %111, %117 : vector<1x32xf32>
    %c4_i32 = arith.constant 4 : i32
    %cst_22 = arith.constant dense<0.000000e+00> : vector<1x128xf32>
    %119 = tpu.matmul %118, %0, %cst_22 {dimension_numbers = #tpu.dot_dimension_numbers<[1], [0], [0], [1], [0, 0, 1, 1], [], []>} : vector<1x32xf32>, vector<32x128xf32>, vector<1x128xf32> -> vector<1x128xf32>
    %120 = arith.index_cast %c4_i32 : i32 to index
    %c0_23 = arith.constant 0 : index
    %121 = vector.load %arg1[%120, %c0_23] : memref<8x128xf32, #tpu.memory_space<vmem>>, vector<1x128xf32>
    %122 = arith.addf %119, %121 : vector<1x128xf32>
    %123 = vector.extract_strided_slice %122 {offsets = [0, 0], sizes = [1, 32], strides = [1, 1]} : vector<1x128xf32> to vector<1x32xf32>
    %124 = arith.negf %123 : vector<1x32xf32>
    %125 = math.exp %124 : vector<1x32xf32>
    %cst_24 = arith.constant 1.000000e+00 : f32
    %126 = vector.broadcast %cst_24 : f32 to vector<1x32xf32>
    %127 = arith.addf %126, %125 : vector<1x32xf32>
    %128 = arith.divf %126, %127 : vector<1x32xf32>
    %129 = vector.extract_strided_slice %122 {offsets = [0, 32], sizes = [1, 32], strides = [1, 1]} : vector<1x128xf32> to vector<1x32xf32>
    %130 = arith.negf %129 : vector<1x32xf32>
    %131 = math.exp %130 : vector<1x32xf32>
    %cst_25 = arith.constant 1.000000e+00 : f32
    %132 = vector.broadcast %cst_25 : f32 to vector<1x32xf32>
    %133 = arith.addf %132, %131 : vector<1x32xf32>
    %134 = arith.divf %132, %133 : vector<1x32xf32>
    %135 = vector.extract_strided_slice %122 {offsets = [0, 64], sizes = [1, 32], strides = [1, 1]} : vector<1x128xf32> to vector<1x32xf32>
    %136 = arith.negf %135 : vector<1x32xf32>
    %137 = math.exp %136 : vector<1x32xf32>
    %cst_26 = arith.constant 1.000000e+00 : f32
    %138 = vector.broadcast %cst_26 : f32 to vector<1x32xf32>
    %139 = arith.addf %138, %137 : vector<1x32xf32>
    %140 = arith.divf %138, %139 : vector<1x32xf32>
    %141 = vector.extract_strided_slice %122 {offsets = [0, 96], sizes = [1, 32], strides = [1, 1]} : vector<1x128xf32> to vector<1x32xf32>
    %142 = math.tanh %141 : vector<1x32xf32>
    %143 = arith.mulf %134, %116 : vector<1x32xf32>
    %144 = arith.mulf %128, %142 : vector<1x32xf32>
    %145 = arith.addf %143, %144 : vector<1x32xf32>
    %146 = math.tanh %145 : vector<1x32xf32>
    %147 = arith.mulf %140, %146 : vector<1x32xf32>
    %c5_i32 = arith.constant 5 : i32
    %cst_27 = arith.constant dense<0.000000e+00> : vector<1x128xf32>
    %148 = tpu.matmul %147, %0, %cst_27 {dimension_numbers = #tpu.dot_dimension_numbers<[1], [0], [0], [1], [0, 0, 1, 1], [], []>} : vector<1x32xf32>, vector<32x128xf32>, vector<1x128xf32> -> vector<1x128xf32>
    %149 = arith.index_cast %c5_i32 : i32 to index
    %c0_28 = arith.constant 0 : index
    %150 = vector.load %arg1[%149, %c0_28] : memref<8x128xf32, #tpu.memory_space<vmem>>, vector<1x128xf32>
    %151 = arith.addf %148, %150 : vector<1x128xf32>
    %152 = vector.extract_strided_slice %151 {offsets = [0, 0], sizes = [1, 32], strides = [1, 1]} : vector<1x128xf32> to vector<1x32xf32>
    %153 = arith.negf %152 : vector<1x32xf32>
    %154 = math.exp %153 : vector<1x32xf32>
    %cst_29 = arith.constant 1.000000e+00 : f32
    %155 = vector.broadcast %cst_29 : f32 to vector<1x32xf32>
    %156 = arith.addf %155, %154 : vector<1x32xf32>
    %157 = arith.divf %155, %156 : vector<1x32xf32>
    %158 = vector.extract_strided_slice %151 {offsets = [0, 32], sizes = [1, 32], strides = [1, 1]} : vector<1x128xf32> to vector<1x32xf32>
    %159 = arith.negf %158 : vector<1x32xf32>
    %160 = math.exp %159 : vector<1x32xf32>
    %cst_30 = arith.constant 1.000000e+00 : f32
    %161 = vector.broadcast %cst_30 : f32 to vector<1x32xf32>
    %162 = arith.addf %161, %160 : vector<1x32xf32>
    %163 = arith.divf %161, %162 : vector<1x32xf32>
    %164 = vector.extract_strided_slice %151 {offsets = [0, 64], sizes = [1, 32], strides = [1, 1]} : vector<1x128xf32> to vector<1x32xf32>
    %165 = arith.negf %164 : vector<1x32xf32>
    %166 = math.exp %165 : vector<1x32xf32>
    %cst_31 = arith.constant 1.000000e+00 : f32
    %167 = vector.broadcast %cst_31 : f32 to vector<1x32xf32>
    %168 = arith.addf %167, %166 : vector<1x32xf32>
    %169 = arith.divf %167, %168 : vector<1x32xf32>
    %170 = vector.extract_strided_slice %151 {offsets = [0, 96], sizes = [1, 32], strides = [1, 1]} : vector<1x128xf32> to vector<1x32xf32>
    %171 = math.tanh %170 : vector<1x32xf32>
    %172 = arith.mulf %163, %145 : vector<1x32xf32>
    %173 = arith.mulf %157, %171 : vector<1x32xf32>
    %174 = arith.addf %172, %173 : vector<1x32xf32>
    %175 = math.tanh %174 : vector<1x32xf32>
    %176 = arith.mulf %169, %175 : vector<1x32xf32>
    %c6_i32 = arith.constant 6 : i32
    %cst_32 = arith.constant dense<0.000000e+00> : vector<1x128xf32>
    %177 = tpu.matmul %176, %0, %cst_32 {dimension_numbers = #tpu.dot_dimension_numbers<[1], [0], [0], [1], [0, 0, 1, 1], [], []>} : vector<1x32xf32>, vector<32x128xf32>, vector<1x128xf32> -> vector<1x128xf32>
    %178 = arith.index_cast %c6_i32 : i32 to index
    %c0_33 = arith.constant 0 : index
    %179 = vector.load %arg1[%178, %c0_33] : memref<8x128xf32, #tpu.memory_space<vmem>>, vector<1x128xf32>
    %180 = arith.addf %177, %179 : vector<1x128xf32>
    %181 = vector.extract_strided_slice %180 {offsets = [0, 0], sizes = [1, 32], strides = [1, 1]} : vector<1x128xf32> to vector<1x32xf32>
    %182 = arith.negf %181 : vector<1x32xf32>
    %183 = math.exp %182 : vector<1x32xf32>
    %cst_34 = arith.constant 1.000000e+00 : f32
    %184 = vector.broadcast %cst_34 : f32 to vector<1x32xf32>
    %185 = arith.addf %184, %183 : vector<1x32xf32>
    %186 = arith.divf %184, %185 : vector<1x32xf32>
    %187 = vector.extract_strided_slice %180 {offsets = [0, 32], sizes = [1, 32], strides = [1, 1]} : vector<1x128xf32> to vector<1x32xf32>
    %188 = arith.negf %187 : vector<1x32xf32>
    %189 = math.exp %188 : vector<1x32xf32>
    %cst_35 = arith.constant 1.000000e+00 : f32
    %190 = vector.broadcast %cst_35 : f32 to vector<1x32xf32>
    %191 = arith.addf %190, %189 : vector<1x32xf32>
    %192 = arith.divf %190, %191 : vector<1x32xf32>
    %193 = vector.extract_strided_slice %180 {offsets = [0, 64], sizes = [1, 32], strides = [1, 1]} : vector<1x128xf32> to vector<1x32xf32>
    %194 = arith.negf %193 : vector<1x32xf32>
    %195 = math.exp %194 : vector<1x32xf32>
    %cst_36 = arith.constant 1.000000e+00 : f32
    %196 = vector.broadcast %cst_36 : f32 to vector<1x32xf32>
    %197 = arith.addf %196, %195 : vector<1x32xf32>
    %198 = arith.divf %196, %197 : vector<1x32xf32>
    %199 = vector.extract_strided_slice %180 {offsets = [0, 96], sizes = [1, 32], strides = [1, 1]} : vector<1x128xf32> to vector<1x32xf32>
    %200 = math.tanh %199 : vector<1x32xf32>
    %201 = arith.mulf %192, %174 : vector<1x32xf32>
    %202 = arith.mulf %186, %200 : vector<1x32xf32>
    %203 = arith.addf %201, %202 : vector<1x32xf32>
    %204 = math.tanh %203 : vector<1x32xf32>
    %205 = arith.mulf %198, %204 : vector<1x32xf32>
    %c7_i32 = arith.constant 7 : i32
    %cst_37 = arith.constant dense<0.000000e+00> : vector<1x128xf32>
    %206 = tpu.matmul %205, %0, %cst_37 {dimension_numbers = #tpu.dot_dimension_numbers<[1], [0], [0], [1], [0, 0, 1, 1], [], []>} : vector<1x32xf32>, vector<32x128xf32>, vector<1x128xf32> -> vector<1x128xf32>
    %207 = arith.index_cast %c7_i32 : i32 to index
    %c0_38 = arith.constant 0 : index
    %208 = vector.load %arg1[%207, %c0_38] : memref<8x128xf32, #tpu.memory_space<vmem>>, vector<1x128xf32>
    %209 = arith.addf %206, %208 : vector<1x128xf32>
    %210 = vector.extract_strided_slice %209 {offsets = [0, 0], sizes = [1, 32], strides = [1, 1]} : vector<1x128xf32> to vector<1x32xf32>
    %211 = arith.negf %210 : vector<1x32xf32>
    %212 = math.exp %211 : vector<1x32xf32>
    %cst_39 = arith.constant 1.000000e+00 : f32
    %213 = vector.broadcast %cst_39 : f32 to vector<1x32xf32>
    %214 = arith.addf %213, %212 : vector<1x32xf32>
    %215 = arith.divf %213, %214 : vector<1x32xf32>
    %216 = vector.extract_strided_slice %209 {offsets = [0, 32], sizes = [1, 32], strides = [1, 1]} : vector<1x128xf32> to vector<1x32xf32>
    %217 = arith.negf %216 : vector<1x32xf32>
    %218 = math.exp %217 : vector<1x32xf32>
    %cst_40 = arith.constant 1.000000e+00 : f32
    %219 = vector.broadcast %cst_40 : f32 to vector<1x32xf32>
    %220 = arith.addf %219, %218 : vector<1x32xf32>
    %221 = arith.divf %219, %220 : vector<1x32xf32>
    %222 = vector.extract_strided_slice %209 {offsets = [0, 64], sizes = [1, 32], strides = [1, 1]} : vector<1x128xf32> to vector<1x32xf32>
    %223 = arith.negf %222 : vector<1x32xf32>
    %224 = math.exp %223 : vector<1x32xf32>
    %cst_41 = arith.constant 1.000000e+00 : f32
    %225 = vector.broadcast %cst_41 : f32 to vector<1x32xf32>
    %226 = arith.addf %225, %224 : vector<1x32xf32>
    %227 = arith.divf %225, %226 : vector<1x32xf32>
    %228 = vector.extract_strided_slice %209 {offsets = [0, 96], sizes = [1, 32], strides = [1, 1]} : vector<1x128xf32> to vector<1x32xf32>
    %229 = math.tanh %228 : vector<1x32xf32>
    %230 = arith.mulf %221, %203 : vector<1x32xf32>
    %231 = arith.mulf %215, %229 : vector<1x32xf32>
    %232 = arith.addf %230, %231 : vector<1x32xf32>
    %233 = math.tanh %232 : vector<1x32xf32>
    %234 = arith.mulf %227, %233 : vector<1x32xf32>
    %c8_i32 = arith.constant 8 : i32
    %c0_42 = arith.constant 0 : index
    %c0_43 = arith.constant 0 : index
    %235 = vector.load %arg3[%c0_42, %c0_43] : memref<1x32xf32, #tpu.memory_space<vmem>>, vector<1x32xf32>
    tpu.vector_store %arg3[%c0_42, %c0_43], %234 {strides = array<i32>} : memref<1x32xf32, #tpu.memory_space<vmem>>, vector<1x32xf32>,
    %c0_44 = arith.constant 0 : index
    %c0_45 = arith.constant 0 : index
    %236 = vector.load %arg4[%c0_44, %c0_45] : memref<1x32xf32, #tpu.memory_space<vmem>>, vector<1x32xf32>
    tpu.vector_store %arg4[%c0_44, %c0_45], %232 {strides = array<i32>} : memref<1x32xf32, #tpu.memory_space<vmem>>, vector<1x32xf32>,
    return
  }
  func.func @transform_0(%arg0: i32) -> (i32, i32) {
    %c0_i32 = arith.constant 0 : i32
    %c0_i32_0 = arith.constant 0 : i32
    %c0_i32_1 = arith.constant 0 : i32
    return %c0_i32, %c0_i32_0 : i32, i32
  }
  func.func @transform_1(%arg0: i32) -> (i32, i32) {
    %c0_i32 = arith.constant 0 : i32
    %c0_i32_0 = arith.constant 0 : i32
    %c0_i32_1 = arith.constant 0 : i32
    return %c0_i32, %c0_i32_0 : i32, i32
  }
  func.func @transform_2(%arg0: i32) -> (i32, i32) {
    %c0_i32 = arith.constant 0 : i32
    %c0_i32_0 = arith.constant 0 : i32
    %c0_i32_1 = arith.constant 0 : i32
    return %c0_i32, %c0_i32_0 : i32, i32
  }
  func.func @transform_3(%arg0: i32) -> (i32, i32) {
    %c0_i32 = arith.constant 0 : i32
    %c0_i32_0 = arith.constant 0 : i32
    %c0_i32_1 = arith.constant 0 : i32
    return %c0_i32, %c0_i32_0 : i32, i32
  }
}

</mosaic_0001>

<llo_original>
// kernel: tpu_custom_call.1
$region0: #{tpu_custom_call.1}
  #allocation0 [shape = 'u32[]', space=smem, size = 0x4, offset = 0x4, fixed_abs, tag = 'smem constant byte address 0x4 - core index']
  #allocation1 [shape = 'u32[144,128]{1,0:T(1,128)}', space=vmem, size = 0x12000, scoped, tag = 'internal scratch']
  %s0 = inlined_call_operand.hbm [shape: f32[8,128], index: 0, kind: input, shape index: {}]
  %s1 = inlined_call_operand.hbm [shape: f32[32,128], index: 1, kind: input, shape index: {}]
  %s2 = inlined_call_operand.hbm [shape: f32[1,32], index: 2, kind: output, shape index: {0}]
  %s3 = inlined_call_operand.hbm [shape: f32[1,32], index: 3, kind: output, shape index: {1}]
  %4 = xla_tuple %s2, %s3
  %s5 = sld [smem:[#allocation0]]
  $region34: #{tpu_custom_call.1} parent=0
    _
  %s7 = ssub.s32 1, %s5
  %s8 = scalar_select 0, %s7, %s5
  $region1: #{tpu_custom_call.1} parent=0
    #allocation2 [shape = 'u8[4096]{0}', space=vmem, size = 0x1000, scoped, tag = 'input window, operand 0, single buffered']
    #allocation3 [shape = 's32[1]{0}', space=sflag, size = 0x4, scoped, tag = 'scoped memory for tpu_custom_call.1']
    #allocation4 [shape = 's32[1]{0}', space=sflag, size = 0x4, scoped, tag = 'scoped memory for tpu_custom_call.1']
    #allocation5 [shape = 'u8[16384]{0}', space=vmem, size = 0x4000, scoped, tag = 'input window, operand 1, single buffered']
    #allocation6 [shape = 's32[1]{0}', space=sflag, size = 0x4, scoped, tag = 'scoped memory for tpu_custom_call.1']
    #allocation7 [shape = 'u8[512]{0}', space=vmem, size = 0x400, scoped, tag = 'output window, operand 0, single buffered']
    #allocation8 [shape = 'u8[512]{0}', space=vmem, size = 0x400, scoped, tag = 'output window, operand 1, single buffered']
    #allocation9 [shape = 's32[1]{0}', space=sflag, size = 0x4, scoped, tag = 'scoped memory for tpu_custom_call.1']
    %9 = vsyncpa [#allocation3], 0
    %10 = vsyncpa [#allocation6], 0
    %11 = vsyncpa [#allocation4], 0
    %12 = vsyncpa [#allocation9], 0
    // Predicated region
    $region2: #{tpu_custom_call.1} parent=1 // pred_check
      _
    $region3: #{tpu_custom_call.1} parent=1 // pred_check_branch
      %14 = sbr.rel (0) target = $region5
    $region4: #{tpu_custom_call.1} parent=1 // pred_region
      %s16 = ssub.s32 128, 128
      %17 = vsyncadd [#allocation3], %s16
      %s19 = sshll.u32 [#allocation2], 4
      %s20 = int_to_ptr.vmem [resolvable:$true] %s19
      %22 = dma.hbm_to_vmem [thread:$0]  %s0, 128, %s20, [#allocation3]
    $region5: #{tpu_custom_call.1} parent=1 // pred_fallthru
      _
    // Predicated region
    $region6: #{tpu_custom_call.1} parent=1 // pred_check
      _
    $region7: #{tpu_custom_call.1} parent=1 // pred_check_branch
      %24 = sbr.rel (0) target = $region9
    $region8: #{tpu_custom_call.1} parent=1 // pred_region
      %s26 = ssub.s32 512, 512
      %27 = vsyncadd [#allocation6], %s26
      %s28 = sshll.u32 [#allocation5], 4
      %s29 = int_to_ptr.vmem [resolvable:$true] %s28
      %34 = dma.hbm_to_vmem [thread:$0]  %s1, 512, %s29, [#allocation6], 128, 128, 8
    $region9: #{tpu_custom_call.1} parent=1 // pred_fallthru
      _
    // Predicated region
    $region10: #{tpu_custom_call.1} parent=1 // pred_check
      _
    $region11: #{tpu_custom_call.1} parent=1 // pred_check_branch
      %36 = sbr.rel (0) target = $region13
    $region12: #{tpu_custom_call.1} parent=1 // pred_region
      %37 = dma.done [#allocation3], 128
    $region13: #{tpu_custom_call.1} parent=1 // pred_fallthru
      _
    // Predicated region
    $region14: #{tpu_custom_call.1} parent=1 // pred_check
      _
    $region15: #{tpu_custom_call.1} parent=1 // pred_check_branch
      %39 = sbr.rel (0) target = $region17
    $region16: #{tpu_custom_call.1} parent=1 // pred_region
      %40 = dma.done [#allocation6], 512
    $region17: #{tpu_custom_call.1} parent=1 // pred_fallthru
      _
    %v41 = vld [vmem:[#allocation5] sm:$0xff]
    %v42 = vld [vmem:[#allocation5 + $0x8] sm:$0xff]
    %v43 = vld [vmem:[#allocation5 + $0x10] sm:$0xff]
    %v44 = vld [vmem:[#allocation5 + $0x18] sm:$0xff]
    %v45 = vld [vmem:[#allocation2] sm:$0x1]
    %vm46 = vcmask 261120
    %v48 = vsel %vm46, 0.0, 0
    %50 = vmatprep.subr.mxu0 0.0
    %51 = vmatpush1.msra.mxu0 0.0
    %52 = vmatprep.subr.mxu0 0.0
    %53 = vmatpush1.msra.mxu0 0.0
    %54 = vmatprep.subr.mxu0 0.0
    %55 = vmatpush1.msra.mxu0 0.0
    %56 = vmatprep.subr.mxu0 0.0
    %57 = vmatpush1.msra.mxu0 0.0
    %58 = vmatprep.subr.mxu0 0.0
    %59 = vmatpush1.msra.mxu0 0.0
    %60 = vmatprep.subr.mxu0 0.0
    %61 = vmatpush1.msra.mxu0 0.0
    %62 = vmatprep.subr.mxu0 0.0
    %63 = vmatpush1.msra.mxu0 0.0
    %64 = vmatprep.subr.mxu0 0.0
    %65 = vmatpush1.msra.mxu0 0.0
    %66 = vmatprep.subr.mxu0 0.0
    %67 = vmatpush1.msra.mxu0 0.0
    %68 = vmatprep.subr.mxu0 0.0
    %69 = vmatpush1.msra.mxu0 0.0
    %70 = vmatprep.subr.mxu0 0.0
    %71 = vmatpush1.msra.mxu0 0.0
    %72 = vmatprep.subr.mxu0 0.0
    %73 = vmatpush1.msra.mxu0 0.0
    %74 = vmatprep.subr.mxu0 0.0
    %75 = vmatpush1.msra.mxu0 %v44
    %76 = vmatprep.subr.mxu0 0.0
    %77 = vmatpush1.msra.mxu0 %v43
    %78 = vmatprep.subr.mxu0 0.0
    %79 = vmatpush1.msra.mxu0 %v42
    %80 = vmatprep.subr.mxu0 0.0
    %81 = vmatpush1.msra.mxu0 %v41
    %82 = vmatprep.subr.mxu0 0.0
    %83 = vmatpush2.msra.mxu0 0.0
    %84 = vmatprep.subr.mxu0 0.0
    %85 = vmatpush2.msra.mxu0 0.0
    %86 = vmatprep.subr.mxu0 0.0
    %87 = vmatpush2.msra.mxu0 0.0
    %88 = vmatprep.subr.mxu0 0.0
    %89 = vmatpush2.msra.mxu0 0.0
    %90 = vmatprep.subr.mxu0 0.0
    %91 = vmatpush2.msra.mxu0 0.0
    %92 = vmatprep.subr.mxu0 0.0
    %93 = vmatpush2.msra.mxu0 0.0
    %94 = vmatprep.subr.mxu0 0.0
    %95 = vmatpush2.msra.mxu0 0.0
    %96 = vmatprep.subr.mxu0 0.0
    %97 = vmatpush2.msra.mxu0 0.0
    %98 = vmatprep.subr.mxu0 0.0
    %99 = vmatpush2.msra.mxu0 0.0
    %100 = vmatprep.subr.mxu0 0.0
    %101 = vmatpush2.msra.mxu0 0.0
    %102 = vmatprep.subr.mxu0 0.0
    %103 = vmatpush2.msra.mxu0 0.0
    %104 = vmatprep.subr.mxu0 0.0
    %105 = vmatpush2.msra.mxu0 0.0
    %106 = vmatprep.subr.mxu0 0.0
    %107 = vmatpush2.msra.mxu0 0.0
    %108 = vmatprep.subr.mxu0 0.0
    %109 = vmatpush2.msra.mxu0 0.0
    %110 = vmatprep.subr.mxu0 0.0
    %111 = vmatpush2.msra.mxu0 0.0
    %112 = vmatprep.subr.mxu0 0.0
    %113 = vmatpush2.msra.mxu0 0.0
    %114 = vmatprep.mubr.f32.mxu0 0.0
    %115 = vmatmul.mubr.f32.gmra.mxu0 %v48
    %v116 = vpop.f32.mrf.mxu0
    %v117 = vadd.f32 %v45, %v116
    %v118 = vpop.f32.mrf.mxu0
    %119 = vdwg.mxu0
    %v120 = vxor.u32 %v117, 2147483648
    %v121 = vmul.f32 %v120, 1.442695
    %v122 = vpow.pop %v121
    %v123 = vadd.f32 %v122, 1.0
    %v124 = vrcp.pop %v123
    %v125 = vmul.f32 1.0, %v124
    %v126 = vtanh.pop %v117
    %v127 = vmul.f32 %v125, 0.0
    %129 = vrot.lane.b32.xlu0 %v126, 32
    %v130 = vpop.permute.xlu0 %129
    %v132 = vmul.f32 %v125, %v130
    %134 = vrot.lane.b32.xlu0 %v132, 32
    %v135 = vpop.permute.xlu0 %134
    %v137 = vadd.f32 %v127, %v135
    %v138 = vtanh.pop %v137
    %140 = vrot.lane.b32.xlu0 %v138, 32
    %v141 = vpop.permute.xlu0 %140
    %v143 = vmul.f32 %v125, %v141
    %v144 = vld [vmem:[#allocation2 + $0x1] sm:$0x1]
    %146 = vrot.lane.b32.xlu0 %v143, 64
    %v147 = vpop.permute.xlu0 %146
    %v148 = vsel %vm46, %v147, 0
    %150 = vmatprep.subr.mxu0 0.0
    %151 = vmatpush1.msra.mxu0 0.0
    %152 = vmatprep.subr.mxu0 0.0
    %153 = vmatpush1.msra.mxu0 0.0
    %154 = vmatprep.subr.mxu0 0.0
    %155 = vmatpush1.msra.mxu0 0.0
    %156 = vmatprep.subr.mxu0 0.0
    %157 = vmatpush1.msra.mxu0 0.0
    %158 = vmatprep.subr.mxu0 0.0
    %159 = vmatpush1.msra.mxu0 0.0
    %160 = vmatprep.subr.mxu0 0.0
    %161 = vmatpush1.msra.mxu0 0.0
    %162 = vmatprep.subr.mxu0 0.0
    %163 = vmatpush1.msra.mxu0 0.0
    %164 = vmatprep.subr.mxu0 0.0
    %165 = vmatpush1.msra.mxu0 0.0
    %166 = vmatprep.subr.mxu0 0.0
    %167 = vmatpush1.msra.mxu0 0.0
    %168 = vmatprep.subr.mxu0 0.0
    %169 = vmatpush1.msra.mxu0 0.0
    %170 = vmatprep.subr.mxu0 0.0
    %171 = vmatpush1.msra.mxu0 0.0
    %172 = vmatprep.subr.mxu0 0.0
    %173 = vmatpush1.msra.mxu0 0.0
    %174 = vmatprep.subr.mxu0 0.0
    %175 = vmatpush1.msra.mxu0 %v44
    %176 = vmatprep.subr.mxu0 0.0
    %177 = vmatpush1.msra.mxu0 %v43
    %178 = vmatprep.subr.mxu0 0.0
    %179 = vmatpush1.msra.mxu0 %v42
    %180 = vmatprep.subr.mxu0 0.0
    %181 = vmatpush1.msra.mxu0 %v41
    %182 = vmatprep.subr.mxu0 0.0
    %183 = vmatpush2.msra.mxu0 0.0
    %184 = vmatprep.subr.mxu0 0.0
    %185 = vmatpush2.msra.mxu0 0.0
    %186 = vmatprep.subr.mxu0 0.0
    %187 = vmatpush2.msra.mxu0 0.0
    %188 = vmatprep.subr.mxu0 0.0
    %189 = vmatpush2.msra.mxu0 0.0
    %190 = vmatprep.subr.mxu0 0.0
    %191 = vmatpush2.msra.mxu0 0.0
    %192 = vmatprep.subr.mxu0 0.0
    %193 = vmatpush2.msra.mxu0 0.0
    %194 = vmatprep.subr.mxu0 0.0
    %195 = vmatpush2.msra.mxu0 0.0
    %196 = vmatprep.subr.mxu0 0.0
    %197 = vmatpush2.msra.mxu0 0.0
    %198 = vmatprep.subr.mxu0 0.0
    %199 = vmatpush2.msra.mxu0 0.0
    %200 = vmatprep.subr.mxu0 0.0
    %201 = vmatpush2.msra.mxu0 0.0
    %202 = vmatprep.subr.mxu0 0.0
    %203 = vmatpush2.msra.mxu0 0.0
    %204 = vmatprep.subr.mxu0 0.0
    %205 = vmatpush2.msra.mxu0 0.0
    %206 = vmatprep.subr.mxu0 0.0
    %207 = vmatpush2.msra.mxu0 0.0
    %208 = vmatprep.subr.mxu0 0.0
    %209 = vmatpush2.msra.mxu0 0.0
    %210 = vmatprep.subr.mxu0 0.0
    %211 = vmatpush2.msra.mxu0 0.0
    %212 = vmatprep.subr.mxu0 0.0
    %213 = vmatpush2.msra.mxu0 0.0
    %214 = vmatprep.mubr.f32.mxu0 0.0
    %215 = vmatmul.mubr.f32.gmra.mxu0 %v148
    %v216 = vpop.f32.mrf.mxu0
    %v217 = vadd.f32 %v144, %v216
    %v218 = vpop.f32.mrf.mxu0
    %219 = vdwg.mxu0
    %v220 = vxor.u32 %v217, 2147483648
    %v221 = vmul.f32 %v220, 1.442695
    %v222 = vpow.pop %v221
    %v223 = vadd.f32 %v222, 1.0
    %v224 = vrcp.pop %v223
    %v225 = vmul.f32 1.0, %v224
    %v226 = vtanh.pop %v217
    %v227 = vmul.f32 %v225, %v137
    %229 = vrot.lane.b32.xlu0 %v226, 32
    %v230 = vpop.permute.xlu0 %229
    %v232 = vmul.f32 %v225, %v230
    %234 = vrot.lane.b32.xlu0 %v232, 32
    %v235 = vpop.permute.xlu0 %234
    %v237 = vadd.f32 %v227, %v235
    %v238 = vtanh.pop %v237
    %240 = vrot.lane.b32.xlu0 %v238, 32
    %v241 = vpop.permute.xlu0 %240
    %v243 = vmul.f32 %v225, %v241
    %v244 = vld [vmem:[#allocation2 + $0x2] sm:$0x1]
    %246 = vrot.lane.b32.xlu0 %v243, 64
    %v247 = vpop.permute.xlu0 %246
    %v248 = vsel %vm46, %v247, 0
    %250 = vmatprep.subr.mxu0 0.0
    %251 = vmatpush1.msra.mxu0 0.0
    %252 = vmatprep.subr.mxu0 0.0
    %253 = vmatpush1.msra.mxu0 0.0
    %254 = vmatprep.subr.mxu0 0.0
    %255 = vmatpush1.msra.mxu0 0.0
    %256 = vmatprep.subr.mxu0 0.0
    %257 = vmatpush1.msra.mxu0 0.0
    %258 = vmatprep.subr.mxu0 0.0
    %259 = vmatpush1.msra.mxu0 0.0
    %260 = vmatprep.subr.mxu0 0.0
    %261 = vmatpush1.msra.mxu0 0.0
    %262 = vmatprep.subr.mxu0 0.0
    %263 = vmatpush1.msra.mxu0 0.0
    %264 = vmatprep.subr.mxu0 0.0
    %265 = vmatpush1.msra.mxu0 0.0
    %266 = vmatprep.subr.mxu0 0.0
    %267 = vmatpush1.msra.mxu0 0.0
    %268 = vmatprep.subr.mxu0 0.0
    %269 = vmatpush1.msra.mxu0 0.0
    %270 = vmatprep.subr.mxu0 0.0
    %271 = vmatpush1.msra.mxu0 0.0
    %272 = vmatprep.subr.mxu0 0.0
    %273 = vmatpush1.msra.mxu0 0.0
    %274 = vmatprep.subr.mxu0 0.0
    %275 = vmatpush1.msra.mxu0 %v44
    %276 = vmatprep.subr.mxu0 0.0
    %277 = vmatpush1.msra.mxu0 %v43
    %278 = vmatprep.subr.mxu0 0.0
    %279 = vmatpush1.msra.mxu0 %v42
    %280 = vmatprep.subr.mxu0 0.0
    %281 = vmatpush1.msra.mxu0 %v41
    %282 = vmatprep.subr.mxu0 0.0
    %283 = vmatpush2.msra.mxu0 0.0
    %284 = vmatprep.subr.mxu0 0.0
    %285 = vmatpush2.msra.mxu0 0.0
    %286 = vmatprep.subr.mxu0 0.0
    %287 = vmatpush2.msra.mxu0 0.0
    %288 = vmatprep.subr.mxu0 0.0
    %289 = vmatpush2.msra.mxu0 0.0
    %290 = vmatprep.subr.mxu0 0.0
    %291 = vmatpush2.msra.mxu0 0.0
    %292 = vmatprep.subr.mxu0 0.0
    %293 = vmatpush2.msra.mxu0 0.0
    %294 = vmatprep.subr.mxu0 0.0
    %295 = vmatpush2.msra.mxu0 0.0
    %296 = vmatprep.subr.mxu0 0.0
    %297 = vmatpush2.msra.mxu0 0.0
    %298 = vmatprep.subr.mxu0 0.0
    %299 = vmatpush2.msra.mxu0 0.0
    %300 = vmatprep.subr.mxu0 0.0
    %301 = vmatpush2.msra.mxu0 0.0
    %302 = vmatprep.subr.mxu0 0.0
    %303 = vmatpush2.msra.mxu0 0.0
    %304 = vmatprep.subr.mxu0 0.0
    %305 = vmatpush2.msra.mxu0 0.0
    %306 = vmatprep.subr.mxu0 0.0
    %307 = vmatpush2.msra.mxu0 0.0
    %308 = vmatprep.subr.mxu0 0.0
    %309 = vmatpush2.msra.mxu0 0.0
    %310 = vmatprep.subr.mxu0 0.0
    %311 = vmatpush2.msra.mxu0 0.0
    %312 = vmatprep.subr.mxu0 0.0
    %313 = vmatpush2.msra.mxu0 0.0
    %314 = vmatprep.mubr.f32.mxu0 0.0
    %315 = vmatmul.mubr.f32.gmra.mxu0 %v248
    %v316 = vpop.f32.mrf.mxu0
    %v317 = vadd.f32 %v244, %v316
    %v318 = vpop.f32.mrf.mxu0
    %319 = vdwg.mxu0
    %v320 = vxor.u32 %v317, 2147483648
    %v321 = vmul.f32 %v320, 1.442695
    %v322 = vpow.pop %v321
    %v323 = vadd.f32 %v322, 1.0
    %v324 = vrcp.pop %v323
    %v325 = vmul.f32 1.0, %v324
    %v326 = vtanh.pop %v317
    %v327 = vmul.f32 %v325, %v237
    %329 = vrot.lane.b32.xlu0 %v326, 32
    %v330 = vpop.permute.xlu0 %329
    %v332 = vmul.f32 %v325, %v330
    %334 = vrot.lane.b32.xlu0 %v332, 32
    %v335 = vpop.permute.xlu0 %334
    %v337 = vadd.f32 %v327, %v335
    %v338 = vtanh.pop %v337
    %340 = vrot.lane.b32.xlu0 %v338, 32
    %v341 = vpop.permute.xlu0 %340
    %v343 = vmul.f32 %v325, %v341
    %v344 = vld [vmem:[#allocation2 + $0x3] sm:$0x1]
    %346 = vrot.lane.b32.xlu0 %v343, 64
    %v347 = vpop.permute.xlu0 %346
    %v348 = vsel %vm46, %v347, 0
    %350 = vmatprep.subr.mxu0 0.0
    %351 = vmatpush1.msra.mxu0 0.0
    %352 = vmatprep.subr.mxu0 0.0
    %353 = vmatpush1.msra.mxu0 0.0
    %354 = vmatprep.subr.mxu0 0.0
    %355 = vmatpush1.msra.mxu0 0.0
    %356 = vmatprep.subr.mxu0 0.0
    %357 = vmatpush1.msra.mxu0 0.0
    %358 = vmatprep.subr.mxu0 0.0
    %359 = vmatpush1.msra.mxu0 0.0
    %360 = vmatprep.subr.mxu0 0.0
    %361 = vmatpush1.msra.mxu0 0.0
    %362 = vmatprep.subr.mxu0 0.0
    %363 = vmatpush1.msra.mxu0 0.0
    %364 = vmatprep.subr.mxu0 0.0
    %365 = vmatpush1.msra.mxu0 0.0
    %366 = vmatprep.subr.mxu0 0.0
    %367 = vmatpush1.msra.mxu0 0.0
    %368 = vmatprep.subr.mxu0 0.0
    %369 = vmatpush1.msra.mxu0 0.0
    %370 = vmatprep.subr.mxu0 0.0
    %371 = vmatpush1.msra.mxu0 0.0
    %372 = vmatprep.subr.mxu0 0.0
    %373 = vmatpush1.msra.mxu0 0.0
    %374 = vmatprep.subr.mxu0 0.0
    %375 = vmatpush1.msra.mxu0 %v44
    %376 = vmatprep.subr.mxu0 0.0
    %377 = vmatpush1.msra.mxu0 %v43
    %378 = vmatprep.subr.mxu0 0.0
    %379 = vmatpush1.msra.mxu0 %v42
    %380 = vmatprep.subr.mxu0 0.0
    %381 = vmatpush1.msra.mxu0 %v41
    %382 = vmatprep.subr.mxu0 0.0
    %383 = vmatpush2.msra.mxu0 0.0
    %384 = vmatprep.subr.mxu0 0.0
    %385 = vmatpush2.msra.mxu0 0.0
    %386 = vmatprep.subr.mxu0 0.0
    %387 = vmatpush2.msra.mxu0 0.0
    %388 = vmatprep.subr.mxu0 0.0
    %389 = vmatpush2.msra.mxu0 0.0
    %390 = vmatprep.subr.mxu0 0.0
    %391 = vmatpush2.msra.mxu0 0.0
    %392 = vmatprep.subr.mxu0 0.0
    %393 = vmatpush2.msra.mxu0 0.0
    %394 = vmatprep.subr.mxu0 0.0
    %395 = vmatpush2.msra.mxu0 0.0
    %396 = vmatprep.subr.mxu0 0.0
    %397 = vmatpush2.msra.mxu0 0.0
    %398 = vmatprep.subr.mxu0 0.0
    %399 = vmatpush2.msra.mxu0 0.0
    %400 = vmatprep.subr.mxu0 0.0
    %401 = vmatpush2.msra.mxu0 0.0
    %402 = vmatprep.subr.mxu0 0.0
    %403 = vmatpush2.msra.mxu0 0.0
    %404 = vmatprep.subr.mxu0 0.0
    %405 = vmatpush2.msra.mxu0 0.0
    %406 = vmatprep.subr.mxu0 0.0
    %407 = vmatpush2.msra.mxu0 0.0
    %408 = vmatprep.subr.mxu0 0.0
    %409 = vmatpush2.msra.mxu0 0.0
    %410 = vmatprep.subr.mxu0 0.0
    %411 = vmatpush2.msra.mxu0 0.0
    %412 = vmatprep.subr.mxu0 0.0
    %413 = vmatpush2.msra.mxu0 0.0
    %414 = vmatprep.mubr.f32.mxu0 0.0
    %415 = vmatmul.mubr.f32.gmra.mxu0 %v348
    %v416 = vpop.f32.mrf.mxu0
    %v417 = vadd.f32 %v344, %v416
    %v418 = vpop.f32.mrf.mxu0
    %419 = vdwg.mxu0
    %v420 = vxor.u32 %v417, 2147483648
    %v421 = vmul.f32 %v420, 1.442695
    %v422 = vpow.pop %v421
    %v423 = vadd.f32 %v422, 1.0
    %v424 = vrcp.pop %v423
    %v425 = vmul.f32 1.0, %v424
    %v426 = vtanh.pop %v417
    %v427 = vmul.f32 %v425, %v337
    %429 = vrot.lane.b32.xlu0 %v426, 32
    %v430 = vpop.permute.xlu0 %429
    %v432 = vmul.f32 %v425, %v430
    %434 = vrot.lane.b32.xlu0 %v432, 32
    %v435 = vpop.permute.xlu0 %434
    %v437 = vadd.f32 %v427, %v435
    %v438 = vtanh.pop %v437
    %440 = vrot.lane.b32.xlu0 %v438, 32
    %v441 = vpop.permute.xlu0 %440
    %v443 = vmul.f32 %v425, %v441
    %v444 = vld [vmem:[#allocation2 + $0x4] sm:$0x1]
    %446 = vrot.lane.b32.xlu0 %v443, 64
    %v447 = vpop.permute.xlu0 %446
    %v448 = vsel %vm46, %v447, 0
    %450 = vmatprep.subr.mxu0 0.0
    %451 = vmatpush1.msra.mxu0 0.0
    %452 = vmatprep.subr.mxu0 0.0
    %453 = vmatpush1.msra.mxu0 0.0
    %454 = vmatprep.subr.mxu0 0.0
    %455 = vmatpush1.msra.mxu0 0.0
    %456 = vmatprep.subr.mxu0 0.0
    %457 = vmatpush1.msra.mxu0 0.0
    %458 = vmatprep.subr.mxu0 0.0
    %459 = vmatpush1.msra.mxu0 0.0
    %460 = vmatprep.subr.mxu0 0.0
    %461 = vmatpush1.msra.mxu0 0.0
    %462 = vmatprep.subr.mxu0 0.0
    %463 = vmatpush1.msra.mxu0 0.0
    %464 = vmatprep.subr.mxu0 0.0
    %465 = vmatpush1.msra.mxu0 0.0
    %466 = vmatprep.subr.mxu0 0.0
    %467 = vmatpush1.msra.mxu0 0.0
    %468 = vmatprep.subr.mxu0 0.0
    %469 = vmatpush1.msra.mxu0 0.0
    %470 = vmatprep.subr.mxu0 0.0
    %471 = vmatpush1.msra.mxu0 0.0
    %472 = vmatprep.subr.mxu0 0.0
    %473 = vmatpush1.msra.mxu0 0.0
    %474 = vmatprep.subr.mxu0 0.0
    %475 = vmatpush1.msra.mxu0 %v44
    %476 = vmatprep.subr.mxu0 0.0
    %477 = vmatpush1.msra.mxu0 %v43
    %478 = vmatprep.subr.mxu0 0.0
    %479 = vmatpush1.msra.mxu0 %v42
    %480 = vmatprep.subr.mxu0 0.0
    %481 = vmatpush1.msra.mxu0 %v41
    %482 = vmatprep.subr.mxu0 0.0
    %483 = vmatpush2.msra.mxu0 0.0
    %484 = vmatprep.subr.mxu0 0.0
    %485 = vmatpush2.msra.mxu0 0.0
    %486 = vmatprep.subr.mxu0 0.0
    %487 = vmatpush2.msra.mxu0 0.0
    %488 = vmatprep.subr.mxu0 0.0
    %489 = vmatpush2.msra.mxu0 0.0
    %490 = vmatprep.subr.mxu0 0.0
    %491 = vmatpush2.msra.mxu0 0.0
    %492 = vmatprep.subr.mxu0 0.0
    %493 = vmatpush2.msra.mxu0 0.0
    %494 = vmatprep.subr.mxu0 0.0
    %495 = vmatpush2.msra.mxu0 0.0
    %496 = vmatprep.subr.mxu0 0.0
    %497 = vmatpush2.msra.mxu0 0.0
    %498 = vmatprep.subr.mxu0 0.0
    %499 = vmatpush2.msra.mxu0 0.0
    %500 = vmatprep.subr.mxu0 0.0
    %501 = vmatpush2.msra.mxu0 0.0
    %502 = vmatprep.subr.mxu0 0.0
    %503 = vmatpush2.msra.mxu0 0.0
    %504 = vmatprep.subr.mxu0 0.0
    %505 = vmatpush2.msra.mxu0 0.0
    %506 = vmatprep.subr.mxu0 0.0
    %507 = vmatpush2.msra.mxu0 0.0
    %508 = vmatprep.subr.mxu0 0.0
    %509 = vmatpush2.msra.mxu0 0.0
    %510 = vmatprep.subr.mxu0 0.0
    %511 = vmatpush2.msra.mxu0 0.0
    %512 = vmatprep.subr.mxu0 0.0
    %513 = vmatpush2.msra.mxu0 0.0
    %514 = vmatprep.mubr.f32.mxu0 0.0
    %515 = vmatmul.mubr.f32.gmra.mxu0 %v448
    %v516 = vpop.f32.mrf.mxu0
    %v517 = vadd.f32 %v444, %v516
    %v518 = vpop.f32.mrf.mxu0
    %519 = vdwg.mxu0
    %v520 = vxor.u32 %v517, 2147483648
    %v521 = vmul.f32 %v520, 1.442695
    %v522 = vpow.pop %v521
    %v523 = vadd.f32 %v522, 1.0
    %v524 = vrcp.pop %v523
    %v525 = vmul.f32 1.0, %v524
    %v526 = vtanh.pop %v517
    %v527 = vmul.f32 %v525, %v437
    %529 = vrot.lane.b32.xlu0 %v526, 32
    %v530 = vpop.permute.xlu0 %529
    %v532 = vmul.f32 %v525, %v530
    %534 = vrot.lane.b32.xlu0 %v532, 32
    %v535 = vpop.permute.xlu0 %534
    %v537 = vadd.f32 %v527, %v535
    %v538 = vtanh.pop %v537
    %540 = vrot.lane.b32.xlu0 %v538, 32
    %v541 = vpop.permute.xlu0 %540
    %v543 = vmul.f32 %v525, %v541
    %v544 = vld [vmem:[#allocation2 + $0x5] sm:$0x1]
    %546 = vrot.lane.b32.xlu0 %v543, 64
    %v547 = vpop.permute.xlu0 %546
    %v548 = vsel %vm46, %v547, 0
    %550 = vmatprep.subr.mxu0 0.0
    %551 = vmatpush1.msra.mxu0 0.0
    %552 = vmatprep.subr.mxu0 0.0
    %553 = vmatpush1.msra.mxu0 0.0
    %554 = vmatprep.subr.mxu0 0.0
    %555 = vmatpush1.msra.mxu0 0.0
    %556 = vmatprep.subr.mxu0 0.0
    %557 = vmatpush1.msra.mxu0 0.0
    %558 = vmatprep.subr.mxu0 0.0
    %559 = vmatpush1.msra.mxu0 0.0
    %560 = vmatprep.subr.mxu0 0.0
    %561 = vmatpush1.msra.mxu0 0.0
    %562 = vmatprep.subr.mxu0 0.0
    %563 = vmatpush1.msra.mxu0 0.0
    %564 = vmatprep.subr.mxu0 0.0
    %565 = vmatpush1.msra.mxu0 0.0
    %566 = vmatprep.subr.mxu0 0.0
    %567 = vmatpush1.msra.mxu0 0.0
    %568 = vmatprep.subr.mxu0 0.0
    %569 = vmatpush1.msra.mxu0 0.0
    %570 = vmatprep.subr.mxu0 0.0
    %571 = vmatpush1.msra.mxu0 0.0
    %572 = vmatprep.subr.mxu0 0.0
    %573 = vmatpush1.msra.mxu0 0.0
    %574 = vmatprep.subr.mxu0 0.0
    %575 = vmatpush1.msra.mxu0 %v44
    %576 = vmatprep.subr.mxu0 0.0
    %577 = vmatpush1.msra.mxu0 %v43
    %578 = vmatprep.subr.mxu0 0.0
    %579 = vmatpush1.msra.mxu0 %v42
    %580 = vmatprep.subr.mxu0 0.0
    %581 = vmatpush1.msra.mxu0 %v41
    %582 = vmatprep.subr.mxu0 0.0
    %583 = vmatpush2.msra.mxu0 0.0
    %584 = vmatprep.subr.mxu0 0.0
    %585 = vmatpush2.msra.mxu0 0.0
    %586 = vmatprep.subr.mxu0 0.0
    %587 = vmatpush2.msra.mxu0 0.0
    %588 = vmatprep.subr.mxu0 0.0
    %589 = vmatpush2.msra.mxu0 0.0
    %590 = vmatprep.subr.mxu0 0.0
    %591 = vmatpush2.msra.mxu0 0.0
    %592 = vmatprep.subr.mxu0 0.0
    %593 = vmatpush2.msra.mxu0 0.0
    %594 = vmatprep.subr.mxu0 0.0
    %595 = vmatpush2.msra.mxu0 0.0
    %596 = vmatprep.subr.mxu0 0.0
    %597 = vmatpush2.msra.mxu0 0.0
    %598 = vmatprep.subr.mxu0 0.0
    %599 = vmatpush2.msra.mxu0 0.0
    %600 = vmatprep.subr.mxu0 0.0
    %601 = vmatpush2.msra.mxu0 0.0
    %602 = vmatprep.subr.mxu0 0.0
    %603 = vmatpush2.msra.mxu0 0.0
    %604 = vmatprep.subr.mxu0 0.0
    %605 = vmatpush2.msra.mxu0 0.0
    %606 = vmatprep.subr.mxu0 0.0
    %607 = vmatpush2.msra.mxu0 0.0
    %608 = vmatprep.subr.mxu0 0.0
    %609 = vmatpush2.msra.mxu0 0.0
    %610 = vmatprep.subr.mxu0 0.0
    %611 = vmatpush2.msra.mxu0 0.0
    %612 = vmatprep.subr.mxu0 0.0
    %613 = vmatpush2.msra.mxu0 0.0
    %614 = vmatprep.mubr.f32.mxu0 0.0
    %615 = vmatmul.mubr.f32.gmra.mxu0 %v548
    %v616 = vpop.f32.mrf.mxu0
    %v617 = vadd.f32 %v544, %v616
    %v618 = vpop.f32.mrf.mxu0
    %619 = vdwg.mxu0
    %v620 = vxor.u32 %v617, 2147483648
    %v621 = vmul.f32 %v620, 1.442695
    %v622 = vpow.pop %v621
    %v623 = vadd.f32 %v622, 1.0
    %v624 = vrcp.pop %v623
    %v625 = vmul.f32 1.0, %v624
    %v626 = vtanh.pop %v617
    %v627 = vmul.f32 %v625, %v537
    %629 = vrot.lane.b32.xlu0 %v626, 32
    %v630 = vpop.permute.xlu0 %629
    %v632 = vmul.f32 %v625, %v630
    %634 = vrot.lane.b32.xlu0 %v632, 32
    %v635 = vpop.permute.xlu0 %634
    %v637 = vadd.f32 %v627, %v635
    %v638 = vtanh.pop %v637
    %640 = vrot.lane.b32.xlu0 %v638, 32
    %v641 = vpop.permute.xlu0 %640
    %v643 = vmul.f32 %v625, %v641
    %v644 = vld [vmem:[#allocation2 + $0x6] sm:$0x1]
    %646 = vrot.lane.b32.xlu0 %v643, 64
    %v647 = vpop.permute.xlu0 %646
    %v648 = vsel %vm46, %v647, 0
    %650 = vmatprep.subr.mxu0 0.0
    %651 = vmatpush1.msra.mxu0 0.0
    %652 = vmatprep.subr.mxu0 0.0
    %653 = vmatpush1.msra.mxu0 0.0
    %654 = vmatprep.subr.mxu0 0.0
    %655 = vmatpush1.msra.mxu0 0.0
    %656 = vmatprep.subr.mxu0 0.0
    %657 = vmatpush1.msra.mxu0 0.0
    %658 = vmatprep.subr.mxu0 0.0
    %659 = vmatpush1.msra.mxu0 0.0
    %660 = vmatprep.subr.mxu0 0.0
    %661 = vmatpush1.msra.mxu0 0.0
    %662 = vmatprep.subr.mxu0 0.0
    %663 = vmatpush1.msra.mxu0 0.0
    %664 = vmatprep.subr.mxu0 0.0
    %665 = vmatpush1.msra.mxu0 0.0
    %666 = vmatprep.subr.mxu0 0.0
    %667 = vmatpush1.msra.mxu0 0.0
    %668 = vmatprep.subr.mxu0 0.0
    %669 = vmatpush1.msra.mxu0 0.0
    %670 = vmatprep.subr.mxu0 0.0
    %671 = vmatpush1.msra.mxu0 0.0
    %672 = vmatprep.subr.mxu0 0.0
    %673 = vmatpush1.msra.mxu0 0.0
    %674 = vmatprep.subr.mxu0 0.0
    %675 = vmatpush1.msra.mxu0 %v44
    %676 = vmatprep.subr.mxu0 0.0
    %677 = vmatpush1.msra.mxu0 %v43
    %678 = vmatprep.subr.mxu0 0.0
    %679 = vmatpush1.msra.mxu0 %v42
    %680 = vmatprep.subr.mxu0 0.0
    %681 = vmatpush1.msra.mxu0 %v41
    %682 = vmatprep.subr.mxu0 0.0
    %683 = vmatpush2.msra.mxu0 0.0
    %684 = vmatprep.subr.mxu0 0.0
    %685 = vmatpush2.msra.mxu0 0.0
    %686 = vmatprep.subr.mxu0 0.0
    %687 = vmatpush2.msra.mxu0 0.0
    %688 = vmatprep.subr.mxu0 0.0
    %689 = vmatpush2.msra.mxu0 0.0
    %690 = vmatprep.subr.mxu0 0.0
    %691 = vmatpush2.msra.mxu0 0.0
    %692 = vmatprep.subr.mxu0 0.0
    %693 = vmatpush2.msra.mxu0 0.0
    %694 = vmatprep.subr.mxu0 0.0
    %695 = vmatpush2.msra.mxu0 0.0
    %696 = vmatprep.subr.mxu0 0.0
    %697 = vmatpush2.msra.mxu0 0.0
    %698 = vmatprep.subr.mxu0 0.0
    %699 = vmatpush2.msra.mxu0 0.0
    %700 = vmatprep.subr.mxu0 0.0
    %701 = vmatpush2.msra.mxu0 0.0
    %702 = vmatprep.subr.mxu0 0.0
    %703 = vmatpush2.msra.mxu0 0.0
    %704 = vmatprep.subr.mxu0 0.0
    %705 = vmatpush2.msra.mxu0 0.0
    %706 = vmatprep.subr.mxu0 0.0
    %707 = vmatpush2.msra.mxu0 0.0
    %708 = vmatprep.subr.mxu0 0.0
    %709 = vmatpush2.msra.mxu0 0.0
    %710 = vmatprep.subr.mxu0 0.0
    %711 = vmatpush2.msra.mxu0 0.0
    %712 = vmatprep.subr.mxu0 0.0
    %713 = vmatpush2.msra.mxu0 0.0
    %714 = vmatprep.mubr.f32.mxu0 0.0
    %715 = vmatmul.mubr.f32.gmra.mxu0 %v648
    %v716 = vpop.f32.mrf.mxu0
    %v717 = vadd.f32 %v644, %v716
    %v718 = vpop.f32.mrf.mxu0
    %719 = vdwg.mxu0
    %v720 = vxor.u32 %v717, 2147483648
    %v721 = vmul.f32 %v720, 1.442695
    %v722 = vpow.pop %v721
    %v723 = vadd.f32 %v722, 1.0
    %v724 = vrcp.pop %v723
    %v725 = vmul.f32 1.0, %v724
    %v726 = vtanh.pop %v717
    %v727 = vmul.f32 %v725, %v637
    %729 = vrot.lane.b32.xlu0 %v726, 32
    %v730 = vpop.permute.xlu0 %729
    %v732 = vmul.f32 %v725, %v730
    %734 = vrot.lane.b32.xlu0 %v732, 32
    %v735 = vpop.permute.xlu0 %734
    %v737 = vadd.f32 %v727, %v735
    %v738 = vtanh.pop %v737
    %740 = vrot.lane.b32.xlu0 %v738, 32
    %v741 = vpop.permute.xlu0 %740
    %v743 = vmul.f32 %v725, %v741
    %v744 = vld [vmem:[#allocation2 + $0x7] sm:$0x1]
    %746 = vrot.lane.b32.xlu0 %v743, 64
    %v747 = vpop.permute.xlu0 %746
    %v748 = vsel %vm46, %v747, 0
    %750 = vmatprep.subr.mxu0 0.0
    %751 = vmatpush1.msra.mxu0 0.0
    %752 = vmatprep.subr.mxu0 0.0
    %753 = vmatpush1.msra.mxu0 0.0
    %754 = vmatprep.subr.mxu0 0.0
    %755 = vmatpush1.msra.mxu0 0.0
    %756 = vmatprep.subr.mxu0 0.0
    %757 = vmatpush1.msra.mxu0 0.0
    %758 = vmatprep.subr.mxu0 0.0
    %759 = vmatpush1.msra.mxu0 0.0
    %760 = vmatprep.subr.mxu0 0.0
    %761 = vmatpush1.msra.mxu0 0.0
    %762 = vmatprep.subr.mxu0 0.0
    %763 = vmatpush1.msra.mxu0 0.0
    %764 = vmatprep.subr.mxu0 0.0
    %765 = vmatpush1.msra.mxu0 0.0
    %766 = vmatprep.subr.mxu0 0.0
    %767 = vmatpush1.msra.mxu0 0.0
    %768 = vmatprep.subr.mxu0 0.0
    %769 = vmatpush1.msra.mxu0 0.0
    %770 = vmatprep.subr.mxu0 0.0
    %771 = vmatpush1.msra.mxu0 0.0
    %772 = vmatprep.subr.mxu0 0.0
    %773 = vmatpush1.msra.mxu0 0.0
    %774 = vmatprep.subr.mxu0 0.0
    %775 = vmatpush1.msra.mxu0 %v44
    %776 = vmatprep.subr.mxu0 0.0
    %777 = vmatpush1.msra.mxu0 %v43
    %778 = vmatprep.subr.mxu0 0.0
    %779 = vmatpush1.msra.mxu0 %v42
    %780 = vmatprep.subr.mxu0 0.0
    %781 = vmatpush1.msra.mxu0 %v41
    %782 = vmatprep.subr.mxu0 0.0
    %783 = vmatpush2.msra.mxu0 0.0
    %784 = vmatprep.subr.mxu0 0.0
    %785 = vmatpush2.msra.mxu0 0.0
    %786 = vmatprep.subr.mxu0 0.0
    %787 = vmatpush2.msra.mxu0 0.0
    %788 = vmatprep.subr.mxu0 0.0
    %789 = vmatpush2.msra.mxu0 0.0
    %790 = vmatprep.subr.mxu0 0.0
    %791 = vmatpush2.msra.mxu0 0.0
    %792 = vmatprep.subr.mxu0 0.0
    %793 = vmatpush2.msra.mxu0 0.0
    %794 = vmatprep.subr.mxu0 0.0
    %795 = vmatpush2.msra.mxu0 0.0
    %796 = vmatprep.subr.mxu0 0.0
    %797 = vmatpush2.msra.mxu0 0.0
    %798 = vmatprep.subr.mxu0 0.0
    %799 = vmatpush2.msra.mxu0 0.0
    %800 = vmatprep.subr.mxu0 0.0
    %801 = vmatpush2.msra.mxu0 0.0
    %802 = vmatprep.subr.mxu0 0.0
    %803 = vmatpush2.msra.mxu0 0.0
    %804 = vmatprep.subr.mxu0 0.0
    %805 = vmatpush2.msra.mxu0 0.0
    %806 = vmatprep.subr.mxu0 0.0
    %807 = vmatpush2.msra.mxu0 0.0
    %808 = vmatprep.subr.mxu0 0.0
    %809 = vmatpush2.msra.mxu0 0.0
    %810 = vmatprep.subr.mxu0 0.0
    %811 = vmatpush2.msra.mxu0 0.0
    %812 = vmatprep.subr.mxu0 0.0
    %813 = vmatpush2.msra.mxu0 0.0
    %814 = vmatprep.mubr.f32.mxu0 0.0
    %815 = vmatmul.mubr.f32.gmra.mxu0 %v748
    %v816 = vpop.f32.mrf.mxu0
    %v817 = vadd.f32 %v744, %v816
    %v818 = vpop.f32.mrf.mxu0
    %819 = vdwg.mxu0
    %v820 = vxor.u32 %v817, 2147483648
    %v821 = vmul.f32 %v820, 1.442695
    %v822 = vpow.pop %v821
    %v823 = vadd.f32 %v822, 1.0
    %v824 = vrcp.pop %v823
    %v825 = vmul.f32 1.0, %v824
    %v826 = vtanh.pop %v817
    %v827 = vmul.f32 %v825, %v737
    %829 = vrot.lane.b32.xlu0 %v826, 32
    %v830 = vpop.permute.xlu0 %829
    %v832 = vmul.f32 %v825, %v830
    %834 = vrot.lane.b32.xlu0 %v832, 32
    %v835 = vpop.permute.xlu0 %834
    %v837 = vadd.f32 %v827, %v835
    %v838 = vtanh.pop %v837
    %840 = vrot.lane.b32.xlu0 %v838, 32
    %v841 = vpop.permute.xlu0 %840
    %v843 = vmul.f32 %v825, %v841
    %845 = vrot.lane.b32.xlu0 %v843, 64
    %v846 = vpop.permute.xlu0 %845
    %vm848 = vcmask 253952
    %849 = vst.msk [vmem:[#allocation7] sm:$0x1] %vm848, %v846
    %851 = vrot.lane.b32.xlu0 %v837, 96
    %v852 = vpop.permute.xlu0 %851
    %854 = vst.msk [vmem:[#allocation8] sm:$0x1] %vm848, %v852
    // Predicated region
    $region18: #{tpu_custom_call.1} parent=1 // pred_check
      _
    $region19: #{tpu_custom_call.1} parent=1 // pred_check_branch
      %856 = sbr.rel (0) target = $region21
    $region20: #{tpu_custom_call.1} parent=1 // pred_region
      %s858 = ssub.s32 16, 16
      %859 = vsyncadd [#allocation4], %s858
      %s861 = sshll.u32 [#allocation7], 4
      %s862 = int_to_ptr.vmem [resolvable:$true] %s861
      %864 = dma.vmem_to_hbm [thread:$0]  %s862, 16, %s2, [#allocation4]
    $region21: #{tpu_custom_call.1} parent=1 // pred_fallthru
      _
    // Predicated region
    $region22: #{tpu_custom_call.1} parent=1 // pred_check
      _
    $region23: #{tpu_custom_call.1} parent=1 // pred_check_branch
      %866 = sbr.rel (0) target = $region25
    $region24: #{tpu_custom_call.1} parent=1 // pred_region
      %s868 = ssub.s32 16, 16
      %869 = vsyncadd [#allocation9], %s868
      %s871 = sshll.u32 [#allocation8], 4
      %s872 = int_to_ptr.vmem [resolvable:$true] %s871
      %874 = dma.vmem_to_hbm [thread:$0]  %s872, 16, %s3, [#allocation9]
    $region25: #{tpu_custom_call.1} parent=1 // pred_fallthru
      _
    // Predicated region
    $region26: #{tpu_custom_call.1} parent=1 // pred_check
      _
    $region27: #{tpu_custom_call.1} parent=1 // pred_check_branch
      %876 = sbr.rel (0) target = $region29
    $region28: #{tpu_custom_call.1} parent=1 // pred_region
      %877 = dma.done [#allocation4], 16
    $region29: #{tpu_custom_call.1} parent=1 // pred_fallthru
      _
    // Predicated region
    $region30: #{tpu_custom_call.1} parent=1 // pred_check
      _
    $region31: #{tpu_custom_call.1} parent=1 // pred_check_branch
      %879 = sbr.rel (0) target = $region33
    $region32: #{tpu_custom_call.1} parent=1 // pred_region
      %880 = dma.done [#allocation9], 16
    $region33: #{tpu_custom_call.1} parent=1 // pred_fallthru
      _
    %881 = vsyncpa [#allocation3], 1
    %882 = vsyncpa [#allocation6], 1
    %883 = vsyncpa [#allocation4], 1
    %884 = vsyncpa [#allocation9], 1

</llo_original>
